<compile_context>
chip_gen: v6e
topology: v6e:2x2x1
jax: 0.10.0
libtpu: 0.0.40
codegen_flags: <defaults>
</compile_context>

<pallas_src>
import jax
import jax.numpy as jnp
from jax.experimental import pallas as pl
from jax.experimental.pallas import tpu as pltpu


def _mlp_kernel(x_ref, wg_ref, wu_ref, wd_ref, o_ref, acc_ref):
    # x_ref  : (tm, H)   activation tile (native dtype, e.g. bf16)
    # wg_ref : (H, ti)   gate-proj weight slice (cols [k*ti, (k+1)*ti) of merged weight)
    # wu_ref : (H, ti)   up-proj weight slice   (cols [I + k*ti, I + (k+1)*ti))
    # wd_ref : (ti, H)   down-proj weight slice (rows [k*ti, (k+1)*ti))
    # o_ref  : (tm, H)   output tile
    # acc_ref: (tm, H)   f32 accumulator, resident across the intermediate axis
    k = pl.program_id(1)

    @pl.when(k == 0)
    def _():
        acc_ref[...] = jnp.zeros_like(acc_ref)

    x = x_ref[...]
    # Keep MXU operands in the native dtype; f32 only in the accumulator.
    gate = jnp.dot(x, wg_ref[...], preferred_element_type=jnp.float32)
    up = jnp.dot(x, wu_ref[...], preferred_element_type=jnp.float32)

    # SiluAndMul in f32 (post-MXU accumulator precision; sigmoid goes to EUP).
    h = gate * jax.nn.sigmoid(gate) * up

    # Partial down projection for this intermediate chunk, accumulated in f32.
    acc_ref[...] += jnp.dot(
        h.astype(wd_ref.dtype), wd_ref[...], preferred_element_type=jnp.float32
    )

    @pl.when(k == pl.num_programs(1) - 1)
    def _():
        o_ref[...] = acc_ref[...].astype(o_ref.dtype)


def llama3_1_mlp(x, w_gate_up, w_down, *, tm=None, ti=None):
    """x: [T, H]; w_gate_up: [H, 2*I]; w_down: [I, H] -> [T, H]."""
    T, H = x.shape
    two_I = w_gate_up.shape[1]
    I = two_I // 2
    assert w_gate_up.shape == (H, two_I)
    assert w_down.shape == (I, H)

    # Token tile: ~256 for prefill-sized T, full T for small (decode) batches.
    if tm is None:
        tm = 256 if (T >= 256 and T % 256 == 0) else T
    assert T % tm == 0, "token count must be divisible by tm"

    # Intermediate tile: largest 2048-capped chunk dividing I. 2048 keeps
    # double-buffered bf16 weight tiles comfortably inside the 64 MiB v7x VMEM
    # budget (and well under v5e/v6e 128 MiB) at H=4096.
    if ti is None:
        ti = min(I, 2048)
        while ti > 128 and I % ti != 0:
            ti //= 2
        if I % ti != 0:
            ti = I
    assert I % ti == 0, "intermediate size must be divisible by ti"
    assert ti % 128 == 0 or ti == I, "ti should be lane-aligned (multiple of 128)"
    n_k = I // ti

    # Advisory cost hint for XLA's scheduler.
    itemsize = x.dtype.itemsize
    cost = pl.CostEstimate(
        flops=6 * T * H * I,
        transcendentals=T * I,
        bytes_accessed=(
            T * H * itemsize                                    # x
            + H * two_I * w_gate_up.dtype.itemsize              # gate/up weights
            + I * H * w_down.dtype.itemsize                     # down weights
            + T * H * itemsize                                  # out
        ),
    )

    return pl.pallas_call(
        _mlp_kernel,
        out_shape=jax.ShapeDtypeStruct((T, H), x.dtype),
        grid_spec=pltpu.PrefetchScalarGridSpec(
            num_scalar_prefetch=0,
            grid=(T // tm, n_k),
            in_specs=[
                pl.BlockSpec((tm, H), lambda i, k: (i, 0)),        # x tile
                pl.BlockSpec((H, ti), lambda i, k: (0, k)),        # gate columns
                pl.BlockSpec((H, ti), lambda i, k: (0, n_k + k)),  # up columns
                pl.BlockSpec((ti, H), lambda i, k: (k, 0)),        # down rows
            ],
            out_specs=pl.BlockSpec((tm, H), lambda i, k: (i, 0)),
            scratch_shapes=[pltpu.VMEM((tm, H), jnp.float32)],
        ),
        compiler_params=pltpu.CompilerParams(
            dimension_semantics=("parallel", "arbitrary"),
            vmem_limit_bytes=64 * 1024 * 1024,
        ),
        cost_estimate=cost,
    )(x, w_gate_up, w_gate_up, w_down)  # merged weight passed twice (gate / up views)


def _reference(x, w_gate_up, w_down):
    gu = x.astype(jnp.float32) @ w_gate_up.astype(jnp.float32)
    I = gu.shape[-1] // 2
    gate, up = gu[:, :I], gu[:, I:]
    h = gate * jax.nn.sigmoid(gate) * up
    return h @ w_down.astype(jnp.float32)


if __name__ == "__main__":
    # Small, lane-aligned shapes consistent with the module:
    # 32 tokens, hidden=128, intermediate=256, bf16 weights/activations.
    T, H, I = 32, 128, 256

    key = jax.random.PRNGKey(0)
    kx, kg, ku, kd = jax.random.split(key, 4)

    dtype = jnp.bfloat16
    x = jax.random.normal(kx, (T, H), dtype=jnp.float32).astype(dtype)
    # torch Linear stores (out, in); build directly in the (in, out) layout the
    # kernel uses. Merged gate||up columns match MergedColumnParallelLinear.
    w_gate = (jax.random.normal(kg, (H, I), dtype=jnp.float32) * 0.05).astype(dtype)
    w_up = (jax.random.normal(ku, (H, I), dtype=jnp.float32) * 0.05).astype(dtype)
    w_gate_up = jnp.concatenate([w_gate, w_up], axis=1)
    w_down = (jax.random.normal(kd, (I, H), dtype=jnp.float32) * 0.05).astype(dtype)

    # tm=16, ti=128 -> grid (2, 2): exercises both the parallel token axis and
    # the accumulated intermediate axis.
    out = llama3_1_mlp(x, w_gate_up, w_down, tm=16, ti=128)
    out = jax.block_until_ready(out)

    ref = _reference(x, w_gate_up, w_down)
    assert out.shape == (T, H)
    err = float(jnp.max(jnp.abs(out.astype(jnp.float32) - ref)))
    # bf16 matmul operands + bf16 h cast -> loosened tolerance vs f32 reference.
    assert err < 2e-2, f"mismatch vs reference: max abs err {err}"

    print("KERNEL_OK")
</pallas_src>

<mosaic_0001>
module attributes {stable_mosaic.version = 11 : i64} {
  func.func @_mlp_kernel(%arg0: i32, %arg1: i32, %arg2: memref<16x128xbf16, #tpu.memory_space<vmem>>, %arg3: memref<128x128xbf16, #tpu.memory_space<vmem>>, %arg4: memref<128x128xbf16, #tpu.memory_space<vmem>>, %arg5: memref<128x128xbf16, #tpu.memory_space<vmem>>, %arg6: memref<16x128xbf16, #tpu.memory_space<vmem>>, %arg7: memref<16x128xf32, #tpu.memory_space<vmem>>) attributes {dimension_semantics = [#tpu.dimension_semantics<parallel>, #tpu.dimension_semantics<arbitrary>], iteration_bounds = array<i64: 2, 2>, scalar_prefetch = 0 : i64, scratch_operands = 1 : i64, tpu.core_type = #tpu.core_type<tc>, window_params = [{transform_indices = @transform_0, window_bounds = array<i64: 16, 128>}, {transform_indices = @transform_1, window_bounds = array<i64: 128, 128>}, {transform_indices = @transform_2, window_bounds = array<i64: 128, 128>}, {transform_indices = @transform_3, window_bounds = array<i64: 128, 128>}, {transform_indices = @transform_4, window_bounds = array<i64: 16, 128>}]} {
    %c0_i32 = arith.constant 0 : i32
    %0 = arith.cmpi eq, %arg1, %c0_i32 : i32
    %1 = arith.extui %0 : i1 to i32
    %c0_i32_0 = arith.constant 0 : i32
    %2 = arith.cmpi ne, %1, %c0_i32_0 : i32
    scf.if %2 {
      %cst_16 = arith.constant 0.000000e+00 : f32
      %24 = vector.broadcast %cst_16 : f32 to vector<16x128xf32>
      %c0_17 = arith.constant 0 : index
      %c0_18 = arith.constant 0 : index
      %25 = vector.load %arg7[%c0_17, %c0_18] : memref<16x128xf32, #tpu.memory_space<vmem>>, vector<16x128xf32>
      tpu.vector_store %arg7[%c0_17, %c0_18], %24 {strides = array<i32>} : memref<16x128xf32, #tpu.memory_space<vmem>>, vector<16x128xf32>,
    } else {
    }
    %c0 = arith.constant 0 : index
    %c0_1 = arith.constant 0 : index
    %3 = vector.load %arg2[%c0, %c0_1] : memref<16x128xbf16, #tpu.memory_space<vmem>>, vector<16x128xbf16>
    %c0_2 = arith.constant 0 : index
    %c0_3 = arith.constant 0 : index
    %4 = vector.load %arg3[%c0_2, %c0_3] : memref<128x128xbf16, #tpu.memory_space<vmem>>, vector<128x128xbf16>
    %cst = arith.constant dense<0.000000e+00> : vector<16x128xf32>
    %5 = tpu.matmul %3, %4, %cst {dimension_numbers = #tpu.dot_dimension_numbers<[1], [0], [0], [1], [0, 0, 1, 1], [], []>} : vector<16x128xbf16>, vector<128x128xbf16>, vector<16x128xf32> -> vector<16x128xf32>
    %c0_4 = arith.constant 0 : index
    %c0_5 = arith.constant 0 : index
    %6 = vector.load %arg4[%c0_4, %c0_5] : memref<128x128xbf16, #tpu.memory_space<vmem>>, vector<128x128xbf16>
    %cst_6 = arith.constant dense<0.000000e+00> : vector<16x128xf32>
    %7 = tpu.matmul %3, %6, %cst_6 {dimension_numbers = #tpu.dot_dimension_numbers<[1], [0], [0], [1], [0, 0, 1, 1], [], []>} : vector<16x128xbf16>, vector<128x128xbf16>, vector<16x128xf32> -> vector<16x128xf32>
    %8 = arith.negf %5 : vector<16x128xf32>
    %9 = math.exp %8 : vector<16x128xf32>
    %cst_7 = arith.constant 1.000000e+00 : f32
    %10 = vector.broadcast %cst_7 : f32 to vector<16x128xf32>
    %11 = arith.addf %10, %9 : vector<16x128xf32>
    %12 = arith.divf %10, %11 : vector<16x128xf32>
    %13 = arith.mulf %5, %12 : vector<16x128xf32>
    %14 = arith.mulf %13, %7 : vector<16x128xf32>
    %c0_8 = arith.constant 0 : index
    %c0_9 = arith.constant 0 : index
    %15 = vector.load %arg7[%c0_8, %c0_9] : memref<16x128xf32, #tpu.memory_space<vmem>>, vector<16x128xf32>
    %16 = arith.truncf %14 : vector<16x128xf32> to vector<16x128xbf16>
    %c0_10 = arith.constant 0 : index
    %c0_11 = arith.constant 0 : index
    %17 = vector.load %arg5[%c0_10, %c0_11] : memref<128x128xbf16, #tpu.memory_space<vmem>>, vector<128x128xbf16>
    %cst_12 = arith.constant dense<0.000000e+00> : vector<16x128xf32>
    %18 = tpu.matmul %16, %17, %cst_12 {dimension_numbers = #tpu.dot_dimension_numbers<[1], [0], [0], [1], [0, 0, 1, 1], [], []>} : vector<16x128xbf16>, vector<128x128xbf16>, vector<16x128xf32> -> vector<16x128xf32>
    %19 = arith.addf %15, %18 : vector<16x128xf32>
    %c0_13 = arith.constant 0 : index
    %c0_14 = arith.constant 0 : index
    %20 = vector.load %arg7[%c0_13, %c0_14] : memref<16x128xf32, #tpu.memory_space<vmem>>, vector<16x128xf32>
    tpu.vector_store %arg7[%c0_13, %c0_14], %19 {strides = array<i32>} : memref<16x128xf32, #tpu.memory_space<vmem>>, vector<16x128xf32>,
    %c1_i32 = arith.constant 1 : i32
    %21 = arith.cmpi eq, %arg1, %c1_i32 : i32
    %22 = arith.extui %21 : i1 to i32
    %c0_i32_15 = arith.constant 0 : i32
    %23 = arith.cmpi ne, %22, %c0_i32_15 : i32
    scf.if %23 {
      %c0_16 = arith.constant 0 : index
      %c0_17 = arith.constant 0 : index
      %24 = vector.load %arg7[%c0_16, %c0_17] : memref<16x128xf32, #tpu.memory_space<vmem>>, vector<16x128xf32>
      %25 = arith.truncf %24 : vector<16x128xf32> to vector<16x128xbf16>
      %c0_18 = arith.constant 0 : index
      %c0_19 = arith.constant 0 : index
      %26 = vector.load %arg6[%c0_18, %c0_19] : memref<16x128xbf16, #tpu.memory_space<vmem>>, vector<16x128xbf16>
      tpu.vector_store %arg6[%c0_18, %c0_19], %25 {strides = array<i32>} : memref<16x128xbf16, #tpu.memory_space<vmem>>, vector<16x128xbf16>,
    } else {
    }
    return
  }
  func.func @transform_0(%arg0: i32, %arg1: i32) -> (i32, i32) {
    %c0_i32 = arith.constant 0 : i32
    %c0_i32_0 = arith.constant 0 : i32
    return %arg0, %c0_i32 : i32, i32
  }
  func.func @transform_1(%arg0: i32, %arg1: i32) -> (i32, i32) {
    %c0_i32 = arith.constant 0 : i32
    %c0_i32_0 = arith.constant 0 : i32
    return %c0_i32, %arg1 : i32, i32
  }
  func.func @transform_2(%arg0: i32, %arg1: i32) -> (i32, i32) {
    %c2_i32 = arith.constant 2 : i32
    %0 = arith.addi %c2_i32, %arg1 : i32
    %c0_i32 = arith.constant 0 : i32
    %c0_i32_0 = arith.constant 0 : i32
    return %c0_i32, %0 : i32, i32
  }
  func.func @transform_3(%arg0: i32, %arg1: i32) -> (i32, i32) {
    %c0_i32 = arith.constant 0 : i32
    %c0_i32_0 = arith.constant 0 : i32
    return %arg1, %c0_i32 : i32, i32
  }
  func.func @transform_4(%arg0: i32, %arg1: i32) -> (i32, i32) {
    %c0_i32 = arith.constant 0 : i32
    %c0_i32_0 = arith.constant 0 : i32
    return %arg0, %c0_i32 : i32, i32
  }
}

</mosaic_0001>

<llo_original>
// kernel: tpu_custom_call.1
$region0: #{tpu_custom_call.1}
  #allocation0 [shape = 'u32[]', space=smem, size = 0x4, offset = 0x4, fixed_abs, tag = 'smem constant byte address 0x4 - core index']
  #allocation1 [shape = 'u32[144,128]{1,0:T(1,128)}', space=vmem, size = 0x12000, scoped, tag = 'internal scratch']
  #allocation2 [shape = 'f32[16,128]{1,0:T(8,128)}', space=vmem, size = 0x2000, scoped, tag = 'scratch operand']
  %s0 = inlined_call_operand.hbm [shape: bf16[32,128], index: 0, kind: input, shape index: {}]
  %s1 = inlined_call_operand.hbm [shape: bf16[128,512], index: 1, kind: input, shape index: {}]
  %s2 = inlined_call_operand.hbm [shape: bf16[128,512], index: 2, kind: input, shape index: {}]
  %s3 = inlined_call_operand.hbm [shape: bf16[256,128], index: 3, kind: input, shape index: {}]
  %s4 = inlined_call_operand.hbm [shape: bf16[32,128], index: 4, kind: output, shape index: {}]
  %s5 = sld [smem:[#allocation0]]
  $region73: #{tpu_custom_call.1} parent=0
    _
  %s7 = ssub.s32 1, %s5
  %s8 = scalar_select 0, %s7, %s5
  $region1: #{tpu_custom_call.1} parent=0
    #allocation3 [shape = 'u8[8192]{0}', space=vmem, size = 0x2000, scoped, tag = 'input window, operand 0']
    #allocation4 [shape = 's32[2]{0}', space=sflag, size = 0x8, scoped, tag = 'scoped memory for tpu_custom_call.1']
    #allocation5 [shape = 's32[2]{0}', space=sflag, size = 0x8, scoped, tag = 'scoped memory for tpu_custom_call.1']
    #allocation6 [shape = 'u8[65536]{0}', space=vmem, size = 0x10000, scoped, tag = 'input window, operand 1']
    #allocation7 [shape = 's32[2]{0}', space=sflag, size = 0x8, scoped, tag = 'scoped memory for tpu_custom_call.1']
    #allocation8 [shape = 'u8[65536]{0}', space=vmem, size = 0x10000, scoped, tag = 'input window, operand 2']
    #allocation9 [shape = 'u8[65536]{0}', space=vmem, size = 0x10000, scoped, tag = 'input window, operand 3']
    #allocation10 [shape = 's32[2]{0}', space=sflag, size = 0x8, scoped, tag = 'scoped memory for tpu_custom_call.1']
    #allocation11 [shape = 'u8[8192]{0}', space=vmem, size = 0x2000, scoped, tag = 'output window, operand 0']
    %9 = vsyncpa [#allocation4], 0
    %s10 = scalar_lea.sflag [#allocation4], 1
    %11 = vsyncpa %s10, 0
    %12 = vsyncpa [#allocation7], 0
    %s13 = scalar_lea.sflag [#allocation7], 1
    %14 = vsyncpa %s13, 0
    %15 = vsyncpa [#allocation10], 0
    %s16 = scalar_lea.sflag [#allocation10], 1
    %17 = vsyncpa %s16, 0
    %18 = vsyncpa [#allocation5], 0
    %s19 = scalar_lea.sflag [#allocation5], 1
    %20 = vsyncpa %s19, 0
    loop: start=0, step=1, limit=6
    $region2: #{tpu_custom_call.1} parent=1 // loop_pre_header
      _
    $region3: #{tpu_custom_call.1} parent=1 // loop_header
      %s22 = sphi 0, %s26
      %p23 = scmp.ge.s32.totalorder %s22, 6
      %s29 = sphi 0, %s41
      %s30 = sphi 0, %s37
      %s31 = sphi 0, %s29
      %s32 = sphi 0, %s30
      %s33 = sphi 0, %s31
      %s34 = sphi 0, %s32
      %s44 = sphi 0, %s46
      %s47 = sphi 0, %s44
      %s48 = sphi 0, %s47
      %s64 = sphi 0, %s48
      %s70 = sphi 0, %s72
      %s73 = sphi 0, %s70
      %s74 = sphi 0, %s73
      %s90 = sphi 0, %s74
      %s98 = sphi 0, %s100
      %s101 = sphi 0, %s98
      %s102 = sphi 0, %s101
      %s118 = sphi 0, %s102
      %s124 = sphi 0, %s126
      %s127 = sphi 0, %s124
      %s128 = sphi 0, %s127
      %s144 = sphi 0, %s128
      %s150 = sphi 0, %s152
      %s153 = sphi 0, %s150
      %s154 = sphi 0, %s153
      %s170 = sphi 0, %s154
    $region4: #{tpu_custom_call.1} parent=1 // loop_header_branch
      %25 = sbr.rel (%p23) target = $region8
    $region5: #{tpu_custom_call.1} parent=1 // loop_body
      %s27 = ssub.s32 %s22, 1
      %s28 = ssub.s32 %s22, 2
      %s35 = sadd.s32 1, %s30
      %p36 = scmp.ge.s32.totalorder %s35, 2
      %s37 = scalar_select %p36, 0, %s35
      %s38 = sadd.s32 1, %s29
      %s39 = scalar_select %p36, %s38, %s29
      %p40 = scmp.ge.s32.totalorder %s39, 2
      %s41 = scalar_select %p40, 0, %s39
      %s42 = ssub.s32 %s29, %s41
      %p43 = scmp.eq.s32.totalorder %s42, 0
      %s45 = sadd.s32 %s44, 1
      %s46 = scalar_select %p43, %s44, %s45
      %p49 = pneg %p43
      %p50 = scmp.eq.s32.totalorder %s22, 3
      %p51 = por %p49, %p50
      %p52 = scmp.ne.s32.totalorder %s44, %s47
      %p53 = scmp.eq.s32.totalorder %s22, 0
      %p54 = por %p52, %p53
      %p55 = scmp.ne.s32.totalorder %s44, %s47
      %p56 = scmp.eq.s32.totalorder %s27, 3
      %p57 = por %p55, %p56
      %p58 = scmp.ne.s32.totalorder %s47, %s48
      %p59 = scmp.eq.s32.totalorder %s27, 0
      %p60 = por %p58, %p59
      %p61 = scmp.ne.s32.totalorder %s47, %s48
      %p62 = scmp.eq.s32.totalorder %s28, 3
      %p63 = por %p61, %p62
      %p65 = scmp.ne.s32.totalorder %s48, %s64
      %p66 = scmp.eq.s32.totalorder %s28, 0
      %p67 = por %p65, %p66
      %s68 = ssub.s32 %s30, %s37
      %p69 = scmp.eq.s32.totalorder %s68, 0
      %s71 = sadd.s32 %s70, 1
      %s72 = scalar_select %p69, %s70, %s71
      %p75 = pneg %p69
      %p76 = scmp.eq.s32.totalorder %s22, 3
      %p77 = por %p75, %p76
      %p78 = scmp.ne.s32.totalorder %s70, %s73
      %p79 = scmp.eq.s32.totalorder %s22, 0
      %p80 = por %p78, %p79
      %p81 = scmp.ne.s32.totalorder %s70, %s73
      %p82 = scmp.eq.s32.totalorder %s27, 3
      %p83 = por %p81, %p82
      %p84 = scmp.ne.s32.totalorder %s73, %s74
      %p85 = scmp.eq.s32.totalorder %s27, 0
      %p86 = por %p84, %p85
      %p87 = scmp.ne.s32.totalorder %s73, %s74
      %p88 = scmp.eq.s32.totalorder %s28, 3
      %p89 = por %p87, %p88
      %p91 = scmp.ne.s32.totalorder %s74, %s90
      %p92 = scmp.eq.s32.totalorder %s28, 0
      %p93 = por %p91, %p92
      %s94 = sadd.s32 %s30, 2
      %s95 = sadd.s32 %s37, 2
      %s96 = ssub.s32 %s94, %s95
      %p97 = scmp.eq.s32.totalorder %s96, 0
      %s99 = sadd.s32 %s98, 1
      %s100 = scalar_select %p97, %s98, %s99
      %p103 = pneg %p97
      %p104 = scmp.eq.s32.totalorder %s22, 3
      %p105 = por %p103, %p104
      %p106 = scmp.ne.s32.totalorder %s98, %s101
      %p107 = scmp.eq.s32.totalorder %s22, 0
      %p108 = por %p106, %p107
      %p109 = scmp.ne.s32.totalorder %s98, %s101
      %p110 = scmp.eq.s32.totalorder %s27, 3
      %p111 = por %p109, %p110
      %p112 = scmp.ne.s32.totalorder %s101, %s102
      %p113 = scmp.eq.s32.totalorder %s27, 0
      %p114 = por %p112, %p113
      %p115 = scmp.ne.s32.totalorder %s101, %s102
      %p116 = scmp.eq.s32.totalorder %s28, 3
      %p117 = por %p115, %p116
      %p119 = scmp.ne.s32.totalorder %s102, %s118
      %p120 = scmp.eq.s32.totalorder %s28, 0
      %p121 = por %p119, %p120
      %s122 = ssub.s32 %s30, %s37
      %p123 = scmp.eq.s32.totalorder %s122, 0
      %s125 = sadd.s32 %s124, 1
      %s126 = scalar_select %p123, %s124, %s125
      %p129 = pneg %p123
      %p130 = scmp.eq.s32.totalorder %s22, 3
      %p131 = por %p129, %p130
      %p132 = scmp.ne.s32.totalorder %s124, %s127
      %p133 = scmp.eq.s32.totalorder %s22, 0
      %p134 = por %p132, %p133
      %p135 = scmp.ne.s32.totalorder %s124, %s127
      %p136 = scmp.eq.s32.totalorder %s27, 3
      %p137 = por %p135, %p136
      %p138 = scmp.ne.s32.totalorder %s127, %s128
      %p139 = scmp.eq.s32.totalorder %s27, 0
      %p140 = por %p138, %p139
      %p141 = scmp.ne.s32.totalorder %s127, %s128
      %p142 = scmp.eq.s32.totalorder %s28, 3
      %p143 = por %p141, %p142
      %p145 = scmp.ne.s32.totalorder %s128, %s144
      %p146 = scmp.eq.s32.totalorder %s28, 0
      %p147 = por %p145, %p146
      %s148 = ssub.s32 %s29, %s41
      %p149 = scmp.eq.s32.totalorder %s148, 0
      %s151 = sadd.s32 %s150, 1
      %s152 = scalar_select %p149, %s150, %s151
      %p155 = pneg %p149
      %p156 = scmp.eq.s32.totalorder %s22, 3
      %p157 = por %p155, %p156
      %p158 = scmp.ne.s32.totalorder %s150, %s153
      %p159 = scmp.eq.s32.totalorder %s22, 0
      %p160 = por %p158, %p159
      %p161 = scmp.ne.s32.totalorder %s150, %s153
      %p162 = scmp.eq.s32.totalorder %s27, 3
      %p163 = por %p161, %p162
      %p164 = scmp.ne.s32.totalorder %s153, %s154
      %p165 = scmp.eq.s32.totalorder %s27, 0
      %p166 = por %p164, %p165
      %p167 = scmp.ne.s32.totalorder %s153, %s154
      %p168 = scmp.eq.s32.totalorder %s28, 3
      %p169 = por %p167, %p168
      %p171 = scmp.ne.s32.totalorder %s154, %s170
      %p172 = scmp.eq.s32.totalorder %s28, 0
      %p173 = por %p171, %p172
      %p174 = scmp.le.s32.totalorder 1, %s22
      %p175 = scmp.lt.s32.totalorder %s22, 5
      %p176 = pnand %p174, %p175
      %p177 = pneg %p176
      // Predicated region
      $region9: #{tpu_custom_call.1} parent=5 // pred_check
        _
      $region10: #{tpu_custom_call.1} parent=5 // pred_check_branch
        %179 = sbr.rel (%p176) target = $region12
      $region11: #{tpu_custom_call.1} parent=5 // pred_region
        %s180 = ssub.s32 %s22, 1
      $region12: #{tpu_custom_call.1} parent=5 // pred_fallthru
        _
      %p181 = scmp.lt.s32.totalorder %s22, 4
      // Predicated region
      $region13: #{tpu_custom_call.1} parent=5 // pred_check
        %p182 = pneg %p181
      $region14: #{tpu_custom_call.1} parent=5 // pred_check_branch
        %184 = sbr.rel (%p182) target = $region16
      $region15: #{tpu_custom_call.1} parent=5 // pred_region
        // Predicated region
        $region17: #{tpu_custom_call.1} parent=15 // pred_check
          %p185 = pneg %p54
        $region18: #{tpu_custom_call.1} parent=15 // pred_check_branch
          %187 = sbr.rel (%p185) target = $region20
        $region19: #{tpu_custom_call.1} parent=15 // pred_region
          %s188 = sand.u32 %s44, 1
          %s189 = scalar_lea.sflag [#allocation4], %s188
          %s190 = sand.u32 %s44, 1
          %s191 = smul.addr %s190, 8
          %s192 = scalar_lea.vmem [#allocation3], %s191
          %s193 = smul.u32 2, %s29
          %s195 = ssub.s32 128, 128
          %196 = vsyncadd %s189, %s195
          %s197 = smul.addr %s193, 64
          %s198 = scalar_lea.hbm %s0, %s197
          %s199 = sshll.u32 %s192, 4
          %s200 = int_to_ptr.vmem [resolvable:$true] %s199
          %205 = dma.hbm_to_vmem [thread:$0]  %s198, 128, %s200, %s189, 64, 64, 4
        $region20: #{tpu_custom_call.1} parent=15 // pred_fallthru
          _
        // Predicated region
        $region21: #{tpu_custom_call.1} parent=15 // pred_check
          %p206 = pneg %p80
        $region22: #{tpu_custom_call.1} parent=15 // pred_check_branch
          %208 = sbr.rel (%p206) target = $region24
        $region23: #{tpu_custom_call.1} parent=15 // pred_region
          %s209 = sand.u32 %s22, 1
          %s210 = scalar_lea.sflag [#allocation7], %s209
          %s211 = sand.u32 %s70, 1
          %s212 = smul.addr %s211, 64
          %s213 = scalar_lea.vmem [#allocation6], %s212
          %s215 = ssub.s32 1024, 1024
          %216 = vsyncadd %s210, %s215
          %s217 = smul.addr %s30, 64
          %s218 = scalar_lea.hbm %s1, %s217
          %s219 = sshll.u32 %s213, 4
          %s220 = int_to_ptr.vmem [resolvable:$true] %s219
          %225 = dma.hbm_to_vmem [thread:$0]  %s218, 1024, %s220, %s210, 256, 64, 4
        $region24: #{tpu_custom_call.1} parent=15 // pred_fallthru
          _
        // Predicated region
        $region25: #{tpu_custom_call.1} parent=15 // pred_check
          %p226 = pneg %p108
        $region26: #{tpu_custom_call.1} parent=15 // pred_check_branch
          %228 = sbr.rel (%p226) target = $region28
        $region27: #{tpu_custom_call.1} parent=15 // pred_region
          %s229 = sand.u32 %s22, 1
          %s230 = scalar_lea.sflag [#allocation7], %s229
          %s231 = sand.u32 %s98, 1
          %s232 = smul.addr %s231, 64
          %s233 = scalar_lea.vmem [#allocation8], %s232
          %s234 = sadd.s32 %s30, 2
          %s236 = ssub.s32 1024, 1024
          %237 = vsyncadd %s230, %s236
          %s238 = smul.addr %s234, 64
          %s239 = scalar_lea.hbm %s2, %s238
          %s240 = sshll.u32 %s233, 4
          %s241 = int_to_ptr.vmem [resolvable:$true] %s240
          %246 = dma.hbm_to_vmem [thread:$0]  %s239, 1024, %s241, %s230, 256, 64, 4
        $region28: #{tpu_custom_call.1} parent=15 // pred_fallthru
          _
        // Predicated region
        $region29: #{tpu_custom_call.1} parent=15 // pred_check
          %p247 = pneg %p134
        $region30: #{tpu_custom_call.1} parent=15 // pred_check_branch
          %249 = sbr.rel (%p247) target = $region32
        $region31: #{tpu_custom_call.1} parent=15 // pred_region
          %s250 = sand.u32 %s124, 1
          %s251 = scalar_lea.sflag [#allocation10], %s250
          %s252 = sand.u32 %s124, 1
          %s253 = smul.addr %s252, 64
          %s254 = scalar_lea.vmem [#allocation9], %s253
          %s255 = smul.u32 16, %s30
          %s257 = ssub.s32 1024, 1024
          %258 = vsyncadd %s251, %s257
          %s259 = smul.addr %s255, 64
          %s260 = scalar_lea.hbm %s3, %s259
          %s261 = sshll.u32 %s254, 4
          %s262 = int_to_ptr.vmem [resolvable:$true] %s261
          %267 = dma.hbm_to_vmem [thread:$0]  %s260, 1024, %s262, %s251, 64, 64, 4
        $region32: #{tpu_custom_call.1} parent=15 // pred_fallthru
          _
      $region16: #{tpu_custom_call.1} parent=5 // pred_fallthru
        _
      %p268 = scmp.le.s32.totalorder 1, %s22
      %p269 = scmp.lt.s32.totalorder %s22, 5
      %p270 = pnand %p268, %p269
      %p271 = pneg %p270
      // Predicated region
      $region33: #{tpu_custom_call.1} parent=5 // pred_check
        _
      $region34: #{tpu_custom_call.1} parent=5 // pred_check_branch
        %273 = sbr.rel (%p270) target = $region36
      $region35: #{tpu_custom_call.1} parent=5 // pred_region
        %s274 = ssub.s32 %s22, 1
        %s275 = sand.u32 %s47, 1
        %s276 = scalar_lea.sflag [#allocation4], %s275
        %s277 = sand.u32 %s47, 1
        %s278 = smul.addr %s277, 8
        %s279 = scalar_lea.vmem [#allocation3], %s278
        // Predicated region
        $region37: #{tpu_custom_call.1} parent=35 // pred_check
          %p280 = pneg %p60
        $region38: #{tpu_custom_call.1} parent=35 // pred_check_branch
          %282 = sbr.rel (%p280) target = $region40
        $region39: #{tpu_custom_call.1} parent=35 // pred_region
          %283 = dma.done %s276, 128
        $region40: #{tpu_custom_call.1} parent=35 // pred_fallthru
          _
        %s284 = sand.u32 %s27, 1
        %s285 = scalar_lea.sflag [#allocation7], %s284
        %s286 = sand.u32 %s73, 1
        %s287 = smul.addr %s286, 64
        %s288 = scalar_lea.vmem [#allocation6], %s287
        // Predicated region
        $region41: #{tpu_custom_call.1} parent=35 // pred_check
          %p289 = pneg %p86
        $region42: #{tpu_custom_call.1} parent=35 // pred_check_branch
          %291 = sbr.rel (%p289) target = $region44
        $region43: #{tpu_custom_call.1} parent=35 // pred_region
          %292 = dma.done %s285, 1024
        $region44: #{tpu_custom_call.1} parent=35 // pred_fallthru
          _
        %s293 = sand.u32 %s27, 1
        %s294 = scalar_lea.sflag [#allocation7], %s293
        %s295 = sand.u32 %s101, 1
        %s296 = smul.addr %s295, 64
        %s297 = scalar_lea.vmem [#allocation8], %s296
        // Predicated region
        $region45: #{tpu_custom_call.1} parent=35 // pred_check
          %p298 = pneg %p114
        $region46: #{tpu_custom_call.1} parent=35 // pred_check_branch
          %300 = sbr.rel (%p298) target = $region48
        $region47: #{tpu_custom_call.1} parent=35 // pred_region
          %301 = dma.done %s294, 1024
        $region48: #{tpu_custom_call.1} parent=35 // pred_fallthru
          _
        %s302 = sand.u32 %s127, 1
        %s303 = scalar_lea.sflag [#allocation10], %s302
        %s304 = sand.u32 %s127, 1
        %s305 = smul.addr %s304, 64
        %s306 = scalar_lea.vmem [#allocation9], %s305
        // Predicated region
        $region49: #{tpu_custom_call.1} parent=35 // pred_check
          %p307 = pneg %p140
        $region50: #{tpu_custom_call.1} parent=35 // pred_check_branch
          %309 = sbr.rel (%p307) target = $region52
        $region51: #{tpu_custom_call.1} parent=35 // pred_region
          %310 = dma.done %s303, 1024
        $region52: #{tpu_custom_call.1} parent=35 // pred_fallthru
          _
        %s311 = sand.u32 %s47, 1
        %s312 = scalar_lea.sflag [#allocation4], %s311
        %s313 = sand.u32 %s47, 1
        %s314 = smul.addr %s313, 8
        %s315 = scalar_lea.vmem [#allocation3], %s314
        %p316 = pneg %p60
        %p317 = pneg %p57
        %s318 = sand.u32 %s27, 1
        %s319 = scalar_lea.sflag [#allocation7], %s318
        %s320 = sand.u32 %s73, 1
        %s321 = smul.addr %s320, 64
        %s322 = scalar_lea.vmem [#allocation6], %s321
        %p323 = pneg %p86
        %p324 = pneg %p83
        %s325 = sand.u32 %s27, 1
        %s326 = scalar_lea.sflag [#allocation7], %s325
        %s327 = sand.u32 %s101, 1
        %s328 = smul.addr %s327, 64
        %s329 = scalar_lea.vmem [#allocation8], %s328
        %p330 = pneg %p114
        %p331 = pneg %p111
        %s332 = sand.u32 %s127, 1
        %s333 = scalar_lea.sflag [#allocation10], %s332
        %s334 = sand.u32 %s127, 1
        %s335 = smul.addr %s334, 64
        %s336 = scalar_lea.vmem [#allocation9], %s335
        %p337 = pneg %p140
        %p338 = pneg %p137
        %p339 = pneg %p166
        %p340 = pneg %p163
        %s341 = sand.u32 %s153, 1
        %s342 = scalar_lea.sflag [#allocation5], %s341
        %s343 = sand.u32 %s153, 1
        %s344 = smul.addr %s343, 8
        %s345 = scalar_lea.vmem [#allocation11], %s344
        %s346 = smul.u32 2, %s31
        %s347 = sadd.s32 %s32, 2
        %s348 = smul.u32 16, %s32
        %s349 = smul.u32 2, %s31
        %p351 = scmp.eq.s32.totalorder %s32, 0
        // Predicated region
        $region53: #{tpu_custom_call.1} parent=35 // pred_check
          %p352 = pneg %p351
        $region54: #{tpu_custom_call.1} parent=35 // pred_check_branch
          %354 = sbr.rel (%p352) target = $region56
        $region55: #{tpu_custom_call.1} parent=35 // pred_region
          %355 = vst [vmem:[#allocation2] sm:$0xff] 0.0
          %356 = vst [vmem:[#allocation2 + $0x8] sm:$0xff] 0.0
        $region56: #{tpu_custom_call.1} parent=35 // pred_fallthru
          _
        %v357 = vld [vmem:[%s279] sm:$0xf]
        %v358 = vld [vmem:[%s279 + $0x4] sm:$0xf]
        %v359 = vld [vmem:[%s288] sm:$0xf]
        %v360 = vld [vmem:[%s288 + $0x4] sm:$0xf]
        %v361 = vld [vmem:[%s288 + $0x8] sm:$0xf]
        %v362 = vld [vmem:[%s288 + $0xc] sm:$0xf]
        %v363 = vld [vmem:[%s288 + $0x10] sm:$0xf]
        %v364 = vld [vmem:[%s288 + $0x14] sm:$0xf]
        %v365 = vld [vmem:[%s288 + $0x18] sm:$0xf]
        %v366 = vld [vmem:[%s288 + $0x1c] sm:$0xf]
        %v367 = vld [vmem:[%s288 + $0x20] sm:$0xf]
        %v368 = vld [vmem:[%s288 + $0x24] sm:$0xf]
        %v369 = vld [vmem:[%s288 + $0x28] sm:$0xf]
        %v370 = vld [vmem:[%s288 + $0x2c] sm:$0xf]
        %v371 = vld [vmem:[%s288 + $0x30] sm:$0xf]
        %v372 = vld [vmem:[%s288 + $0x34] sm:$0xf]
        %v373 = vld [vmem:[%s288 + $0x38] sm:$0xf]
        %v374 = vld [vmem:[%s288 + $0x3c] sm:$0xf]
        %v377 = vunpack.c.l.b16 %v357
        %v378 = vunpack.c.l.b16 %v358
        %v379 = vpack.c.b16 %v378, %v377
        %v397 = vunpack.c.l.b16 %v359
        %v398 = vunpack.c.l.b16 %v360
        %v399 = vunpack.c.l.b16 %v361
        %v400 = vunpack.c.l.b16 %v362
        %v401 = vunpack.c.l.b16 %v363
        %v402 = vunpack.c.l.b16 %v364
        %v403 = vunpack.c.l.b16 %v365
        %v404 = vunpack.c.l.b16 %v366
        %v405 = vunpack.c.l.b16 %v367
        %v406 = vunpack.c.l.b16 %v368
        %v407 = vunpack.c.l.b16 %v369
        %v408 = vunpack.c.l.b16 %v370
        %v409 = vunpack.c.l.b16 %v371
        %v410 = vunpack.c.l.b16 %v372
        %v411 = vunpack.c.l.b16 %v373
        %v412 = vunpack.c.l.b16 %v374
        %v413 = vpack.c.b16 %v398, %v397
        %v414 = vpack.c.b16 %v400, %v399
        %v415 = vpack.c.b16 %v402, %v401
        %v416 = vpack.c.b16 %v404, %v403
        %v417 = vpack.c.b16 %v406, %v405
        %v418 = vpack.c.b16 %v408, %v407
        %v419 = vpack.c.b16 %v410, %v409
        %v420 = vpack.c.b16 %v412, %v411
        %429 = vmatprep.subr.bf16.mxu0 0
        %430 = vmatpush1.bf16.msra.mxu0 %v420
        %431 = vmatprep.subr.bf16.mxu0 0
        %432 = vmatpush1.bf16.msra.mxu0 %v419
        %433 = vmatprep.subr.bf16.mxu0 0
        %434 = vmatpush1.bf16.msra.mxu0 %v418
        %435 = vmatprep.subr.bf16.mxu0 0
        %436 = vmatpush1.bf16.msra.mxu0 %v417
        %437 = vmatprep.subr.bf16.mxu0 0
        %438 = vmatpush1.bf16.msra.mxu0 %v416
        %439 = vmatprep.subr.bf16.mxu0 0
        %440 = vmatpush1.bf16.msra.mxu0 %v415
        %441 = vmatprep.subr.bf16.mxu0 0
        %442 = vmatpush1.bf16.msra.mxu0 %v414
        %443 = vmatprep.subr.bf16.mxu0 0
        %444 = vmatpush1.bf16.msra.mxu0 %v413
        %445 = vmatprep.subr.bf16.mxu0 0
        %446 = vmatpush2.bf16.msra.mxu0 0
        %447 = vmatprep.subr.bf16.mxu0 0
        %448 = vmatpush2.bf16.msra.mxu0 0
        %449 = vmatprep.subr.bf16.mxu0 0
        %450 = vmatpush2.bf16.msra.mxu0 0
        %451 = vmatprep.subr.bf16.mxu0 0
        %452 = vmatpush2.bf16.msra.mxu0 0
        %453 = vmatprep.subr.bf16.mxu0 0
        %454 = vmatpush2.bf16.msra.mxu0 0
        %455 = vmatprep.subr.bf16.mxu0 0
        %456 = vmatpush2.bf16.msra.mxu0 0
        %457 = vmatprep.subr.bf16.mxu0 0
        %458 = vmatpush2.bf16.msra.mxu0 0
        %459 = vmatprep.subr.bf16.mxu0 0
        %460 = vmatpush2.bf16.msra.mxu0 0
        %461 = vmatprep.mubr.bf16.mxu0 0
        %462 = vmatmul.mubr.bf16.gmra.mxu0 %v379
        %v463 = vpop.f32.mrf.mxu0
        %v464 = vadd.f32 0.0, %v463
        %v465 = vpop.f32.mrf.mxu0
        %v466 = vpop.f32.mrf.mxu0
        %v467 = vadd.f32 0.0, %v466
        %v468 = vpop.f32.mrf.mxu0
        %469 = vdwg.mxu0
        %v470 = vld [vmem:[%s297] sm:$0xf]
        %v471 = vld [vmem:[%s297 + $0x4] sm:$0xf]
        %v472 = vld [vmem:[%s297 + $0x8] sm:$0xf]
        %v473 = vld [vmem:[%s297 + $0xc] sm:$0xf]
        %v474 = vld [vmem:[%s297 + $0x10] sm:$0xf]
        %v475 = vld [vmem:[%s297 + $0x14] sm:$0xf]
        %v476 = vld [vmem:[%s297 + $0x18] sm:$0xf]
        %v477 = vld [vmem:[%s297 + $0x1c] sm:$0xf]
        %v478 = vld [vmem:[%s297 + $0x20] sm:$0xf]
        %v479 = vld [vmem:[%s297 + $0x24] sm:$0xf]
        %v480 = vld [vmem:[%s297 + $0x28] sm:$0xf]
        %v481 = vld [vmem:[%s297 + $0x2c] sm:$0xf]
        %v482 = vld [vmem:[%s297 + $0x30] sm:$0xf]
        %v483 = vld [vmem:[%s297 + $0x34] sm:$0xf]
        %v484 = vld [vmem:[%s297 + $0x38] sm:$0xf]
        %v485 = vld [vmem:[%s297 + $0x3c] sm:$0xf]
        %v502 = vunpack.c.l.b16 %v470
        %v503 = vunpack.c.l.b16 %v471
        %v504 = vunpack.c.l.b16 %v472
        %v505 = vunpack.c.l.b16 %v473
        %v506 = vunpack.c.l.b16 %v474
        %v507 = vunpack.c.l.b16 %v475
        %v508 = vunpack.c.l.b16 %v476
        %v509 = vunpack.c.l.b16 %v477
        %v510 = vunpack.c.l.b16 %v478
        %v511 = vunpack.c.l.b16 %v479
        %v512 = vunpack.c.l.b16 %v480
        %v513 = vunpack.c.l.b16 %v481
        %v514 = vunpack.c.l.b16 %v482
        %v515 = vunpack.c.l.b16 %v483
        %v516 = vunpack.c.l.b16 %v484
        %v517 = vunpack.c.l.b16 %v485
        %v518 = vpack.c.b16 %v503, %v502
        %v519 = vpack.c.b16 %v505, %v504
        %v520 = vpack.c.b16 %v507, %v506
        %v521 = vpack.c.b16 %v509, %v508
        %v522 = vpack.c.b16 %v511, %v510
        %v523 = vpack.c.b16 %v513, %v512
        %v524 = vpack.c.b16 %v515, %v514
        %v525 = vpack.c.b16 %v517, %v516
        %534 = vmatprep.subr.bf16.mxu0 0
        %535 = vmatpush1.bf16.msra.mxu0 %v525
        %536 = vmatprep.subr.bf16.mxu0 0
        %537 = vmatpush1.bf16.msra.mxu0 %v524
        %538 = vmatprep.subr.bf16.mxu0 0
        %539 = vmatpush1.bf16.msra.mxu0 %v523
        %540 = vmatprep.subr.bf16.mxu0 0
        %541 = vmatpush1.bf16.msra.mxu0 %v522
        %542 = vmatprep.subr.bf16.mxu0 0
        %543 = vmatpush1.bf16.msra.mxu0 %v521
        %544 = vmatprep.subr.bf16.mxu0 0
        %545 = vmatpush1.bf16.msra.mxu0 %v520
        %546 = vmatprep.subr.bf16.mxu0 0
        %547 = vmatpush1.bf16.msra.mxu0 %v519
        %548 = vmatprep.subr.bf16.mxu0 0
        %549 = vmatpush1.bf16.msra.mxu0 %v518
        %550 = vmatprep.subr.bf16.mxu0 0
        %551 = vmatpush2.bf16.msra.mxu0 0
        %552 = vmatprep.subr.bf16.mxu0 0
        %553 = vmatpush2.bf16.msra.mxu0 0
        %554 = vmatprep.subr.bf16.mxu0 0
        %555 = vmatpush2.bf16.msra.mxu0 0
        %556 = vmatprep.subr.bf16.mxu0 0
        %557 = vmatpush2.bf16.msra.mxu0 0
        %558 = vmatprep.subr.bf16.mxu0 0
        %559 = vmatpush2.bf16.msra.mxu0 0
        %560 = vmatprep.subr.bf16.mxu0 0
        %561 = vmatpush2.bf16.msra.mxu0 0
        %562 = vmatprep.subr.bf16.mxu0 0
        %563 = vmatpush2.bf16.msra.mxu0 0
        %564 = vmatprep.subr.bf16.mxu0 0
        %565 = vmatpush2.bf16.msra.mxu0 0
        %566 = vmatprep.mubr.bf16.mxu0 0
        %567 = vmatmul.mubr.bf16.gmra.mxu0 %v379
        %v568 = vpop.f32.mrf.mxu0
        %v569 = vadd.f32 0.0, %v568
        %v570 = vpop.f32.mrf.mxu0
        %v571 = vpop.f32.mrf.mxu0
        %v572 = vadd.f32 0.0, %v571
        %v573 = vpop.f32.mrf.mxu0
        %574 = vdwg.mxu0
        %v575 = vxor.u32 %v464, 2147483648
        %v576 = vxor.u32 %v467, 2147483648
        %v577 = vmul.f32 %v575, 1.442695
        %v578 = vpow.pop %v577
        %v579 = vmul.f32 %v576, 1.442695
        %v580 = vpow.pop %v579
        %v581 = vadd.f32 %v578, 1.0
        %v582 = vadd.f32 %v580, 1.0
        %v583 = vrcp.pop %v581
        %v584 = vmul.f32 1.0, %v583
        %v585 = vrcp.pop %v582
        %v586 = vmul.f32 1.0, %v585
        %v587 = vmul.f32 %v464, %v584
        %v588 = vmul.f32 %v467, %v586
        %v589 = vmul.f32 %v587, %v569
        %v590 = vmul.f32 %v588, %v572
        %v591 = vld [vmem:[#allocation2] sm:$0xff]
        %v592 = vld [vmem:[#allocation2 + $0x8] sm:$0xff]
        %v593 = vpack.c.bf16 %v590, %v589
        %v594 = vld [vmem:[%s306] sm:$0xf]
        %v595 = vld [vmem:[%s306 + $0x4] sm:$0xf]
        %v596 = vld [vmem:[%s306 + $0x8] sm:$0xf]
        %v597 = vld [vmem:[%s306 + $0xc] sm:$0xf]
        %v598 = vld [vmem:[%s306 + $0x10] sm:$0xf]
        %v599 = vld [vmem:[%s306 + $0x14] sm:$0xf]
        %v600 = vld [vmem:[%s306 + $0x18] sm:$0xf]
        %v601 = vld [vmem:[%s306 + $0x1c] sm:$0xf]
        %v602 = vld [vmem:[%s306 + $0x20] sm:$0xf]
        %v603 = vld [vmem:[%s306 + $0x24] sm:$0xf]
        %v604 = vld [vmem:[%s306 + $0x28] sm:$0xf]
        %v605 = vld [vmem:[%s306 + $0x2c] sm:$0xf]
        %v606 = vld [vmem:[%s306 + $0x30] sm:$0xf]
        %v607 = vld [vmem:[%s306 + $0x34] sm:$0xf]
        %v608 = vld [vmem:[%s306 + $0x38] sm:$0xf]
        %v609 = vld [vmem:[%s306 + $0x3c] sm:$0xf]
        %v626 = vunpack.c.l.b16 %v594
        %v627 = vunpack.c.l.b16 %v595
        %v628 = vunpack.c.l.b16 %v596
        %v629 = vunpack.c.l.b16 %v597
        %v630 = vunpack.c.l.b16 %v598
        %v631 = vunpack.c.l.b16 %v599
        %v632 = vunpack.c.l.b16 %v600
        %v633 = vunpack.c.l.b16 %v601
        %v634 = vunpack.c.l.b16 %v602
        %v635 = vunpack.c.l.b16 %v603
        %v636 = vunpack.c.l.b16 %v604
        %v637 = vunpack.c.l.b16 %v605
        %v638 = vunpack.c.l.b16 %v606
        %v639 = vunpack.c.l.b16 %v607
        %v640 = vunpack.c.l.b16 %v608
        %v641 = vunpack.c.l.b16 %v609
        %v642 = vpack.c.b16 %v627, %v626
        %v643 = vpack.c.b16 %v629, %v628
        %v644 = vpack.c.b16 %v631, %v630
        %v645 = vpack.c.b16 %v633, %v632
        %v646 = vpack.c.b16 %v635, %v634
        %v647 = vpack.c.b16 %v637, %v636
        %v648 = vpack.c.b16 %v639, %v638
        %v649 = vpack.c.b16 %v641, %v640
        %658 = vmatprep.subr.bf16.mxu0 0
        %659 = vmatpush1.bf16.msra.mxu0 %v649
        %660 = vmatprep.subr.bf16.mxu0 0
        %661 = vmatpush1.bf16.msra.mxu0 %v648
        %662 = vmatprep.subr.bf16.mxu0 0
        %663 = vmatpush1.bf16.msra.mxu0 %v647
        %664 = vmatprep.subr.bf16.mxu0 0
        %665 = vmatpush1.bf16.msra.mxu0 %v646
        %666 = vmatprep.subr.bf16.mxu0 0
        %667 = vmatpush1.bf16.msra.mxu0 %v645
        %668 = vmatprep.subr.bf16.mxu0 0
        %669 = vmatpush1.bf16.msra.mxu0 %v644
        %670 = vmatprep.subr.bf16.mxu0 0
        %671 = vmatpush1.bf16.msra.mxu0 %v643
        %672 = vmatprep.subr.bf16.mxu0 0
        %673 = vmatpush1.bf16.msra.mxu0 %v642
        %674 = vmatprep.subr.bf16.mxu0 0
        %675 = vmatpush2.bf16.msra.mxu0 0
        %676 = vmatprep.subr.bf16.mxu0 0
        %677 = vmatpush2.bf16.msra.mxu0 0
        %678 = vmatprep.subr.bf16.mxu0 0
        %679 = vmatpush2.bf16.msra.mxu0 0
        %680 = vmatprep.subr.bf16.mxu0 0
        %681 = vmatpush2.bf16.msra.mxu0 0
        %682 = vmatprep.subr.bf16.mxu0 0
        %683 = vmatpush2.bf16.msra.mxu0 0
        %684 = vmatprep.subr.bf16.mxu0 0
        %685 = vmatpush2.bf16.msra.mxu0 0
        %686 = vmatprep.subr.bf16.mxu0 0
        %687 = vmatpush2.bf16.msra.mxu0 0
        %688 = vmatprep.subr.bf16.mxu0 0
        %689 = vmatpush2.bf16.msra.mxu0 0
        %690 = vmatprep.mubr.bf16.mxu0 0
        %691 = vmatmul.mubr.bf16.gmra.mxu0 %v593
        %v692 = vpop.f32.mrf.mxu0
        %v693 = vadd.f32 0.0, %v692
        %v694 = vpop.f32.mrf.mxu0
        %v695 = vpop.f32.mrf.mxu0
        %v696 = vadd.f32 0.0, %v695
        %v697 = vpop.f32.mrf.mxu0
        %698 = vdwg.mxu0
        %v699 = vadd.f32 %v591, %v693
        %v700 = vadd.f32 %v592, %v696
        %701 = vst [vmem:[#allocation2] sm:$0xff] %v699
        %702 = vst [vmem:[#allocation2 + $0x8] sm:$0xff] %v700
        %p703 = scmp.eq.s32.totalorder %s32, 1
        // Predicated region
        $region57: #{tpu_custom_call.1} parent=35 // pred_check
          %p704 = pneg %p703
        $region58: #{tpu_custom_call.1} parent=35 // pred_check_branch
          %706 = sbr.rel (%p704) target = $region60
        $region59: #{tpu_custom_call.1} parent=35 // pred_region
          %v707 = vld [vmem:[#allocation2] sm:$0xff]
          %v708 = vld [vmem:[#allocation2 + $0x8] sm:$0xff]
          %v709 = vpack.c.bf16 %v708, %v707
          %v711 = vunpack.c.l.b16 %v709
          %v712 = vunpack.c.h.b16 %v709
          %v713 = vpack.c.b16 %v711, %v711
          %v714 = vpack.c.b16 %v712, %v712
          %717 = vst [vmem:[%s345] sm:$0xf] %v713
          %718 = vst [vmem:[%s345 + $0x4] sm:$0xf] %v714
        $region60: #{tpu_custom_call.1} parent=35 // pred_fallthru
          _
        %s719 = sand.u32 %s153, 1
        %s720 = scalar_lea.sflag [#allocation5], %s719
        %s721 = sand.u32 %s153, 1
        %s722 = smul.addr %s721, 8
        %s723 = scalar_lea.vmem [#allocation11], %s722
        // Predicated region
        $region61: #{tpu_custom_call.1} parent=35 // pred_check
          %p724 = pneg %p163
        $region62: #{tpu_custom_call.1} parent=35 // pred_check_branch
          %726 = sbr.rel (%p724) target = $region64
        $region63: #{tpu_custom_call.1} parent=35 // pred_region
          %s727 = smul.u32 2, %s31
          %s729 = ssub.s32 128, 128
          %730 = vsyncadd %s720, %s729
          %s731 = smul.addr %s727, 64
          %s732 = scalar_lea.hbm %s4, %s731
          %s733 = sshll.u32 %s723, 4
          %s734 = int_to_ptr.vmem [resolvable:$true] %s733
          %739 = dma.vmem_to_hbm [thread:$0]  %s734, 128, %s732, %s720, 64, 64, 4
        $region64: #{tpu_custom_call.1} parent=35 // pred_fallthru
          _
      $region36: #{tpu_custom_call.1} parent=5 // pred_fallthru
        _
      %p740 = scmp.le.s32.totalorder 2, %s22
      // Predicated region
      $region65: #{tpu_custom_call.1} parent=5 // pred_check
        %p741 = pneg %p740
      $region66: #{tpu_custom_call.1} parent=5 // pred_check_branch
        %743 = sbr.rel (%p741) target = $region68
      $region67: #{tpu_custom_call.1} parent=5 // pred_region
        %s744 = ssub.s32 %s22, 2
        // Predicated region
        $region69: #{tpu_custom_call.1} parent=67 // pred_check
          %p745 = pneg %p169
        $region70: #{tpu_custom_call.1} parent=67 // pred_check_branch
          %747 = sbr.rel (%p745) target = $region72
        $region71: #{tpu_custom_call.1} parent=67 // pred_region
          %s748 = sand.u32 %s154, 1
          %s749 = scalar_lea.sflag [#allocation5], %s748
          %s750 = sand.u32 %s154, 1
          %s751 = smul.addr %s750, 8
          %s752 = scalar_lea.vmem [#allocation11], %s751
          %753 = dma.done %s749, 128
        $region72: #{tpu_custom_call.1} parent=67 // pred_fallthru
          _
      $region68: #{tpu_custom_call.1} parent=5 // pred_fallthru
        _
    $region6: #{tpu_custom_call.1} parent=1 // loop_footer
      %s26 = sadd.s32 1, %s22
    $region7: #{tpu_custom_call.1} parent=1 // loop_footer_branch
      %21 = sbr.rel target = $region3
    $region8: #{tpu_custom_call.1} parent=1 // loop_exit
      _
    %754 = vsyncpa [#allocation4], 1
    %s755 = scalar_lea.sflag [#allocation4], 1
    %756 = vsyncpa %s755, 1
    %757 = vsyncpa [#allocation7], 1
    %s758 = scalar_lea.sflag [#allocation7], 1
    %759 = vsyncpa %s758, 1
    %760 = vsyncpa [#allocation10], 1
    %s761 = scalar_lea.sflag [#allocation10], 1
    %762 = vsyncpa %s761, 1
    %763 = vsyncpa [#allocation5], 1
    %s764 = scalar_lea.sflag [#allocation5], 1
    %765 = vsyncpa %s764, 1

</llo_original>
